<compile_context>
chip_gen: v5e
topology: v5e:2x2
jax: 0.10.0
libtpu: 0.0.40
codegen_flags: <defaults>
</compile_context>

<pallas_src>
import jax
import jax.numpy as jnp
from jax.experimental import pallas as pl
from jax.experimental.pallas import tpu as pltpu


# ----------------------------------------------------------------- helpers

def _round_up(x, m):
    return ((x + m - 1) // m) * m


def _pad_axis(a, axis, new_size):
    pad = new_size - a.shape[axis]
    if pad == 0:
        return a
    widths = [(0, 0)] * a.ndim
    widths[axis] = (0, pad)
    return jnp.pad(a, widths)


# --------------------------------------------------------- shared-weight path

def _matmul_bias_kernel(x_ref, w_ref, b_ref, o_ref, acc_ref):
    # x_ref: (tm, tk), w_ref: (tk, tn), b_ref: (1, tn), o_ref: (tm, tn)
    @pl.when(pl.program_id(2) == 0)
    def _():
        acc_ref[...] = jnp.zeros_like(acc_ref)

    acc_ref[...] += jnp.dot(x_ref[...], w_ref[...],
                            preferred_element_type=jnp.float32)

    @pl.when(pl.program_id(2) == pl.num_programs(2) - 1)
    def _():
        o_ref[...] = (acc_ref[...] + b_ref[...].astype(jnp.float32)).astype(o_ref.dtype)


def _shared_linear(x_bcl, weight, bias):
    """individual=False: one nn.Linear applied to the last axis of (B, C, L_in)."""
    B, C, L_in = x_bcl.shape
    L_out = weight.shape[-1]
    M, K, N = B * C, L_in, L_out

    x2 = x_bcl.reshape(M, K)                # contiguous reshape: free, no transpose
    w2 = weight.reshape(K, N)
    b2 = bias.reshape(1, N)

    # Lane-dense output: pad N to a multiple of 128 (256-wide tiles fill the v6e/v7x MXU,
    # and a 256 tile is two clean passes on v5e's 128-wide MXU).
    N_pad = _round_up(N, 128)
    tn = 256 if N_pad % 256 == 0 else 128

    # Sublane-dense activations: pad M to a multiple of 8, tile at <= 512 rows.
    M8 = _round_up(M, 8)
    tm = min(512, M8)
    M_pad = _round_up(M8, tm)

    # K: keep full unless large, then tile with the f32 accumulator ("arbitrary" axis).
    if K > 1024:
        tk = 512
        K_pad = _round_up(K, tk)
    else:
        tk = K
        K_pad = K

    x2 = _pad_axis(_pad_axis(x2, 0, M_pad), 1, K_pad)
    w2 = _pad_axis(_pad_axis(w2, 0, K_pad), 1, N_pad)
    b2 = _pad_axis(b2, 1, N_pad)

    out = pl.pallas_call(
        _matmul_bias_kernel,
        out_shape=jax.ShapeDtypeStruct((M_pad, N_pad), x_bcl.dtype),
        grid_spec=pltpu.PrefetchScalarGridSpec(
            num_scalar_prefetch=0,
            grid=(M_pad // tm, N_pad // tn, K_pad // tk),
            in_specs=[
                pl.BlockSpec((tm, tk), lambda i, j, k: (i, k)),
                pl.BlockSpec((tk, tn), lambda i, j, k: (k, j)),
                pl.BlockSpec((1, tn), lambda i, j, k: (0, j)),
            ],
            out_specs=pl.BlockSpec((tm, tn), lambda i, j, k: (i, j)),
            scratch_shapes=[pltpu.VMEM((tm, tn), jnp.float32)],
        ),
        compiler_params=pltpu.CompilerParams(
            dimension_semantics=("parallel", "parallel", "arbitrary"),
            vmem_limit_bytes=32 * 1024 * 1024,
        ),
    )(x2, w2, b2)

    return out[:M, :N].reshape(B, C, N)


# ------------------------------------------------------ per-channel (individual) path

def _grouped_linear_kernel(x_ref, w_ref, b_ref, o_ref):
    # x_ref: (Cb, B, L_in), w_ref: (Cb, L_in, N_pad), b_ref: (Cb, 1, N_pad)
    y = jnp.einsum("cbl,clo->cbo", x_ref[...], w_ref[...],
                   preferred_element_type=jnp.float32)
    o_ref[...] = (y + b_ref[...].astype(jnp.float32)).astype(o_ref.dtype)


def _choose_cb(C, B, L_in, N_pad, dtype_bytes=4, budget_bytes=8 * 1024 * 1024):
    """Largest divisor of C whose double-buffered tiles fit the VMEM budget and,
    when possible, leaves a grid of length >= 2 so both v7x TensorCores get work."""
    per_ch = (L_in * N_pad + B * L_in + B * N_pad + N_pad) * dtype_bytes * 2
    cap = max(1, budget_bytes // per_ch)
    best = 1
    for cb in range(1, C + 1):
        if C % cb == 0 and cb <= cap and (C // cb >= 2 or C == 1):
            best = cb
    return best


def _individual_linear(x_bcl, weight, bias):
    """individual=True: one nn.Linear per channel."""
    B, C, L_in = x_bcl.shape
    L_out = weight.shape[-1]
    N_pad = _round_up(L_out, 128)

    # Channel-major for the kernel.  With small B the op is weight-bandwidth bound, so
    # these two activation transposes are noise; for large B the model should emit /
    # accept (C, B, L) directly instead.
    x_cbl = jnp.transpose(x_bcl, (1, 0, 2))           # (C, B, L_in)
    w = _pad_axis(weight, 2, N_pad)                    # (C, L_in, N_pad)
    b = _pad_axis(bias, 2, N_pad)                      # (C, 1, N_pad)

    Cb = _choose_cb(C, B, L_in, N_pad)

    out = pl.pallas_call(
        _grouped_linear_kernel,
        out_shape=jax.ShapeDtypeStruct((C, B, N_pad), x_bcl.dtype),
        grid_spec=pltpu.PrefetchScalarGridSpec(
            num_scalar_prefetch=0,
            grid=(C // Cb,),
            in_specs=[
                pl.BlockSpec((Cb, B, L_in), lambda c: (c, 0, 0)),
                # (v5e tuning knob: if the weight DMA is still exposed, add
                #  pipeline_mode=pl.Buffered(3) to this spec.)
                pl.BlockSpec((Cb, L_in, N_pad), lambda c: (c, 0, 0)),
                pl.BlockSpec((Cb, 1, N_pad), lambda c: (c, 0, 0)),
            ],
            out_specs=pl.BlockSpec((Cb, B, N_pad), lambda c: (c, 0, 0)),
        ),
        compiler_params=pltpu.CompilerParams(
            dimension_semantics=("parallel",),
            vmem_limit_bytes=32 * 1024 * 1024,
        ),
    )(x_cbl, w, b)

    return jnp.transpose(out[:, :, :L_out], (1, 0, 2))  # (B, C, L_out)


# ----------------------------------------------------------------- public API

def block_model_forward(x_bcl, weight, bias, individual):
    """
    x_bcl  : (B, C, L_in)   -- same layout as the PyTorch module input
    weight : (C, L_in, L_out) if individual else (1, L_in, L_out)
    bias   : (C, 1, L_out)    if individual else (1, 1, L_out)
    returns (B, C, L_out)
    """
    if individual:
        return _individual_linear(x_bcl, weight, bias)
    return _shared_linear(x_bcl, weight, bias)


def init_params(key, channels, input_len, out_len, individual):
    """Deterministic synthetic parameters (shapes match the nn.Module).
    PyTorch nn.Linear weight is (out, in); we store the transposed (in, out)
    so the kernels use a plain x @ W layout."""
    kw, kb = jax.random.split(key)
    n_sets = channels if individual else 1
    weight = jax.random.normal(kw, (n_sets, input_len, out_len), jnp.float32) * 0.05
    bias = jax.random.normal(kb, (n_sets, 1, out_len), jnp.float32) * 0.01
    return weight, bias


def _reference(x_bcl, weight, bias, individual):
    if individual:
        return jnp.einsum("bcl,clo->bco", x_bcl, weight) + bias[:, 0, :][None, :, :]
    return jnp.einsum("bcl,lo->bco", x_bcl, weight[0]) + bias[0, 0][None, None, :]


if __name__ == "__main__":
    B, C, L_in, L_out = 2, 4, 16, 32
    key = jax.random.PRNGKey(0)
    kx, kp = jax.random.split(key)
    x = jax.random.normal(kx, (B, C, L_in), jnp.float32)

    ok = True
    for individual in (False, True):
        weight, bias = init_params(kp, C, L_in, L_out, individual)
        out = block_model_forward(x, weight, bias, individual)
        out = jax.block_until_ready(out)
        ref = _reference(x, weight, bias, individual)
        ok = ok and bool(jnp.allclose(out, ref, atol=1e-5, rtol=1e-5))
        assert out.shape == (B, C, L_out)

    print("KERNEL_OK" if ok else "KERNEL_MISMATCH")
</pallas_src>

<mosaic_0001>
module attributes {stable_mosaic.version = 11 : i64} {
  func.func @_matmul_bias_kernel(%arg0: i32, %arg1: i32, %arg2: i32, %arg3: memref<8x16xf32, #tpu.memory_space<vmem>>, %arg4: memref<16x128xf32, #tpu.memory_space<vmem>>, %arg5: memref<1x128xf32, #tpu.memory_space<vmem>>, %arg6: memref<8x128xf32, #tpu.memory_space<vmem>>, %arg7: memref<8x128xf32, #tpu.memory_space<vmem>>) attributes {dimension_semantics = [#tpu.dimension_semantics<parallel>, #tpu.dimension_semantics<parallel>, #tpu.dimension_semantics<arbitrary>], iteration_bounds = array<i64: 1, 1, 1>, scalar_prefetch = 0 : i64, scratch_operands = 1 : i64, tpu.core_type = #tpu.core_type<tc>, window_params = [{transform_indices = @transform_0, window_bounds = array<i64: 8, 16>}, {transform_indices = @transform_1, window_bounds = array<i64: 16, 128>}, {transform_indices = @transform_2, window_bounds = array<i64: 1, 128>}, {transform_indices = @transform_3, window_bounds = array<i64: 8, 128>}]} {
    %c0_i32 = arith.constant 0 : i32
    %0 = arith.cmpi eq, %arg2, %c0_i32 : i32
    %1 = arith.extui %0 : i1 to i32
    %c0_i32_0 = arith.constant 0 : i32
    %2 = arith.cmpi ne, %1, %c0_i32_0 : i32
    scf.if %2 {
      %cst_10 = arith.constant 0.000000e+00 : f32
      %12 = vector.broadcast %cst_10 : f32 to vector<8x128xf32>
      %c0_11 = arith.constant 0 : index
      %c0_12 = arith.constant 0 : index
      %13 = vector.load %arg7[%c0_11, %c0_12] : memref<8x128xf32, #tpu.memory_space<vmem>>, vector<8x128xf32>
      tpu.vector_store %arg7[%c0_11, %c0_12], %12 {strides = array<i32>} : memref<8x128xf32, #tpu.memory_space<vmem>>, vector<8x128xf32>,
    } else {
    }
    %c0 = arith.constant 0 : index
    %c0_1 = arith.constant 0 : index
    %3 = vector.load %arg7[%c0, %c0_1] : memref<8x128xf32, #tpu.memory_space<vmem>>, vector<8x128xf32>
    %c0_2 = arith.constant 0 : index
    %c0_3 = arith.constant 0 : index
    %4 = vector.load %arg3[%c0_2, %c0_3] : memref<8x16xf32, #tpu.memory_space<vmem>>, vector<8x16xf32>
    %c0_4 = arith.constant 0 : index
    %c0_5 = arith.constant 0 : index
    %5 = vector.load %arg4[%c0_4, %c0_5] : memref<16x128xf32, #tpu.memory_space<vmem>>, vector<16x128xf32>
    %cst = arith.constant dense<0.000000e+00> : vector<8x128xf32>
    %6 = tpu.matmul %4, %5, %cst {dimension_numbers = #tpu.dot_dimension_numbers<[1], [0], [0], [1], [0, 0, 1, 1], [], []>} : vector<8x16xf32>, vector<16x128xf32>, vector<8x128xf32> -> vector<8x128xf32>
    %7 = arith.addf %3, %6 : vector<8x128xf32>
    %c0_6 = arith.constant 0 : index
    %c0_7 = arith.constant 0 : index
    %8 = vector.load %arg7[%c0_6, %c0_7] : memref<8x128xf32, #tpu.memory_space<vmem>>, vector<8x128xf32>
    tpu.vector_store %arg7[%c0_6, %c0_7], %7 {strides = array<i32>} : memref<8x128xf32, #tpu.memory_space<vmem>>, vector<8x128xf32>,
    %c0_i32_8 = arith.constant 0 : i32
    %9 = arith.cmpi eq, %arg2, %c0_i32_8 : i32
    %10 = arith.extui %9 : i1 to i32
    %c0_i32_9 = arith.constant 0 : i32
    %11 = arith.cmpi ne, %10, %c0_i32_9 : i32
    scf.if %11 {
      %c0_10 = arith.constant 0 : index
      %c0_11 = arith.constant 0 : index
      %12 = vector.load %arg7[%c0_10, %c0_11] : memref<8x128xf32, #tpu.memory_space<vmem>>, vector<8x128xf32>
      %c0_12 = arith.constant 0 : index
      %c0_13 = arith.constant 0 : index
      %13 = vector.load %arg5[%c0_12, %c0_13] : memref<1x128xf32, #tpu.memory_space<vmem>>, vector<1x128xf32>
      %14 = vector.broadcast %13 : vector<1x128xf32> to vector<8x128xf32>
      %15 = arith.addf %12, %14 : vector<8x128xf32>
      %c0_14 = arith.constant 0 : index
      %c0_15 = arith.constant 0 : index
      %16 = vector.load %arg6[%c0_14, %c0_15] : memref<8x128xf32, #tpu.memory_space<vmem>>, vector<8x128xf32>
      tpu.vector_store %arg6[%c0_14, %c0_15], %15 {strides = array<i32>} : memref<8x128xf32, #tpu.memory_space<vmem>>, vector<8x128xf32>,
    } else {
    }
    return
  }
  func.func @transform_0(%arg0: i32, %arg1: i32, %arg2: i32) -> (i32, i32) {
    %c0_i32 = arith.constant 0 : i32
    return %arg0, %arg2 : i32, i32
  }
  func.func @transform_1(%arg0: i32, %arg1: i32, %arg2: i32) -> (i32, i32) {
    %c0_i32 = arith.constant 0 : i32
    return %arg2, %arg1 : i32, i32
  }
  func.func @transform_2(%arg0: i32, %arg1: i32, %arg2: i32) -> (i32, i32) {
    %c0_i32 = arith.constant 0 : i32
    %c0_i32_0 = arith.constant 0 : i32
    return %c0_i32, %arg1 : i32, i32
  }
  func.func @transform_3(%arg0: i32, %arg1: i32, %arg2: i32) -> (i32, i32) {
    %c0_i32 = arith.constant 0 : i32
    return %arg0, %arg1 : i32, i32
  }
}

</mosaic_0001>

<llo_original>
// kernel: tpu_custom_call.1
$region0: #{tpu_custom_call.1}
  #allocation0 [shape = 'u32[]', space=smem, size = 0x4, offset = 0x4, fixed_abs, tag = 'smem constant byte address 0x4 - core index']
  #allocation1 [shape = 'u32[72,128]{1,0:T(1,128)}', space=vmem, size = 0x9000, scoped, tag = 'internal scratch']
  #allocation2 [shape = 'f32[8,128]{1,0:T(8,128)}', space=vmem, size = 0x1000, scoped, tag = 'scratch operand']
  %s0 = inlined_call_operand.hbm [shape: f32[8,16], index: 0, kind: input, shape index: {}]
  %s1 = inlined_call_operand.hbm [shape: f32[16,128], index: 1, kind: input, shape index: {}]
  %s2 = inlined_call_operand.vmem [shape: f32[1,128], index: 2, kind: input, shape index: {}]
  %s3 = inlined_call_operand.hbm [shape: f32[8,128], index: 3, kind: output, shape index: {}]
  %s4 = sld [smem:[#allocation0]]
  $region38: #{tpu_custom_call.1} parent=0
    _
  %s6 = ssub.s32 1, %s4
  %s7 = scalar_select 0, %s6, %s4
  $region1: #{tpu_custom_call.1} parent=0
    #allocation3 [shape = 'u8[4096]{0}', space=vmem, size = 0x1000, scoped, tag = 'input window, operand 0, single buffered']
    #allocation4 [shape = 's32[1]{0}', space=sflag, size = 0x4, scoped, tag = 'scoped memory for tpu_custom_call.1']
    #allocation5 [shape = 's32[1]{0}', space=sflag, size = 0x4, scoped, tag = 'scoped memory for tpu_custom_call.1']
    #allocation6 [shape = 'u8[8192]{0}', space=vmem, size = 0x2000, scoped, tag = 'input window, operand 1, single buffered']
    #allocation7 [shape = 's32[1]{0}', space=sflag, size = 0x4, scoped, tag = 'scoped memory for tpu_custom_call.1']
    #allocation8 [shape = 'u8[4096]{0}', space=vmem, size = 0x1000, scoped, tag = 'output window, operand 0, single buffered']
    %8 = vsyncpa [#allocation4], 0
    %9 = vsyncpa [#allocation7], 0
    %10 = vsyncpa [#allocation5], 0
    // Predicated region
    $region2: #{tpu_custom_call.1} parent=1 // pred_check
      _
    $region3: #{tpu_custom_call.1} parent=1 // pred_check_branch
      %12 = sbr.rel (0) target = $region5
    $region4: #{tpu_custom_call.1} parent=1 // pred_region
      %14 = vsyncadd [#allocation4], 0
      %s16 = sshll.u32 %s0, 4
      %s17 = int_to_ptr.hbm [resolvable:$true] %s16
      %s18 = sshll.u32 [#allocation3], 4
      %s19 = int_to_ptr.vmem [resolvable:$true] %s18
      %21 = dma.hbm_to_vmem [thread:$0]  %s17, 128, %s19, [#allocation4]
    $region5: #{tpu_custom_call.1} parent=1 // pred_fallthru
      _
    // Predicated region
    $region6: #{tpu_custom_call.1} parent=1 // pred_check
      _
    $region7: #{tpu_custom_call.1} parent=1 // pred_check_branch
      %23 = sbr.rel (0) target = $region9
    $region8: #{tpu_custom_call.1} parent=1 // pred_region
      %25 = vsyncadd [#allocation7], 0
      %s26 = sshll.u32 %s1, 4
      %s27 = int_to_ptr.hbm [resolvable:$true] %s26
      %s28 = sshll.u32 [#allocation6], 4
      %s29 = int_to_ptr.vmem [resolvable:$true] %s28
      %34 = dma.hbm_to_vmem [thread:$0]  %s27, 256, %s29, [#allocation7], 128, 128, 8
    $region9: #{tpu_custom_call.1} parent=1 // pred_fallthru
      _
    // Predicated region
    $region10: #{tpu_custom_call.1} parent=1 // pred_check
      _
    $region11: #{tpu_custom_call.1} parent=1 // pred_check_branch
      %36 = sbr.rel (0) target = $region13
    $region12: #{tpu_custom_call.1} parent=1 // pred_region
      _
    $region13: #{tpu_custom_call.1} parent=1 // pred_fallthru
      _
    // Predicated region
    $region14: #{tpu_custom_call.1} parent=1 // pred_check
      _
    $region15: #{tpu_custom_call.1} parent=1 // pred_check_branch
      %38 = sbr.rel (0) target = $region17
    $region16: #{tpu_custom_call.1} parent=1 // pred_region
      %40 = dma.done [#allocation4], 128
    $region17: #{tpu_custom_call.1} parent=1 // pred_fallthru
      _
    // Predicated region
    $region18: #{tpu_custom_call.1} parent=1 // pred_check
      _
    $region19: #{tpu_custom_call.1} parent=1 // pred_check_branch
      %42 = sbr.rel (0) target = $region21
    $region20: #{tpu_custom_call.1} parent=1 // pred_region
      %44 = dma.done [#allocation7], 256
    $region21: #{tpu_custom_call.1} parent=1 // pred_fallthru
      _
    %p45 = scmp.eq.s32.totalorder 0, 0
    // Predicated region
    $region22: #{tpu_custom_call.1} parent=1 // pred_check
      %p46 = pneg %p45
    $region23: #{tpu_custom_call.1} parent=1 // pred_check_branch
      %48 = sbr.rel (%p46) target = $region25
    $region24: #{tpu_custom_call.1} parent=1 // pred_region
      %49 = vst [vmem:[#allocation2] sm:$0xff] 0.0
    $region25: #{tpu_custom_call.1} parent=1 // pred_fallthru
      _
    %v50 = vld [vmem:[#allocation2] sm:$0xff]
    %v51 = vld [vmem:[#allocation3] sm:$0xff]
    %v52 = vld [vmem:[#allocation6] sm:$0xff]
    %v53 = vld [vmem:[#allocation6 + $0x8] sm:$0xff]
    %vm54 = vcmask 130048
    %v56 = vsel %vm54, %v51, 0
    %58 = vmatpush.msra.mxu0 0.0
    %59 = vmatpush.msra.mxu0 0.0
    %60 = vmatpush.msra.mxu0 0.0
    %61 = vmatpush.msra.mxu0 0.0
    %62 = vmatpush.msra.mxu0 0.0
    %63 = vmatpush.msra.mxu0 0.0
    %64 = vmatpush.msra.mxu0 0.0
    %65 = vmatpush.msra.mxu0 0.0
    %66 = vmatpush.msra.mxu0 0.0
    %67 = vmatpush.msra.mxu0 0.0
    %68 = vmatpush.msra.mxu0 0.0
    %69 = vmatpush.msra.mxu0 0.0
    %70 = vmatpush.msra.mxu0 0.0
    %71 = vmatpush.msra.mxu0 0.0
    %72 = vmatpush.msra.mxu0 %v53
    %73 = vmatpush.msra.mxu0 %v52
    %74 = vmatmul.f32.gmra.mxu0 %v56
    %v75 = vpop.f32.mrf.mxu0
    %v76 = vadd.f32 0.0, %v75
    %77 = vdwg.mxu0
    %v78 = vadd.f32 %v50, %v76
    %79 = vst [vmem:[#allocation2] sm:$0xff] %v78
    // Predicated region
    $region26: #{tpu_custom_call.1} parent=1 // pred_check
      %p80 = pneg %p45
    $region27: #{tpu_custom_call.1} parent=1 // pred_check_branch
      %82 = sbr.rel (%p80) target = $region29
    $region28: #{tpu_custom_call.1} parent=1 // pred_region
      %v83 = vld [vmem:[#allocation2] sm:$0xff]
      %v84 = vld [vmem:[%s2] sm:$0x1]
      %v86 = vperm.slane %v84, 0
      %v88 = vadd.f32 %v83, %v86
      %89 = vst [vmem:[#allocation8] sm:$0xff] %v88
    $region29: #{tpu_custom_call.1} parent=1 // pred_fallthru
      _
    // Predicated region
    $region30: #{tpu_custom_call.1} parent=1 // pred_check
      _
    $region31: #{tpu_custom_call.1} parent=1 // pred_check_branch
      %91 = sbr.rel (0) target = $region33
    $region32: #{tpu_custom_call.1} parent=1 // pred_region
      %93 = vsyncadd [#allocation5], 0
      %s95 = sshll.u32 [#allocation8], 4
      %s96 = int_to_ptr.vmem [resolvable:$true] %s95
      %s97 = sshll.u32 %s3, 4
      %s98 = int_to_ptr.hbm [resolvable:$true] %s97
      %100 = dma.vmem_to_hbm [thread:$0]  %s96, 128, %s98, [#allocation5]
    $region33: #{tpu_custom_call.1} parent=1 // pred_fallthru
      _
    // Predicated region
    $region34: #{tpu_custom_call.1} parent=1 // pred_check
      _
    $region35: #{tpu_custom_call.1} parent=1 // pred_check_branch
      %102 = sbr.rel (0) target = $region37
    $region36: #{tpu_custom_call.1} parent=1 // pred_region
      %104 = dma.done [#allocation5], 128
    $region37: #{tpu_custom_call.1} parent=1 // pred_fallthru
      _
    %105 = vsyncpa [#allocation4], 1
    %106 = vsyncpa [#allocation7], 1
    %107 = vsyncpa [#allocation5], 1

</llo_original>
